<compile_context>
chip_gen: v7x
topology: tpu7x:2x2x1
jax: 0.10.0
libtpu: 0.0.40
codegen_flags: <defaults>
</compile_context>

<pallas_src>
import functools

import jax
import jax.numpy as jnp
from jax import lax
from jax.experimental import pallas as pl
from jax.experimental.pallas import tpu as pltpu

TINY_NUMBER = 1e-6

_LANES = 128
_TILE_ROWS = 2048                 # 2048 x 128 x 4 B = 1 MiB of real data per block
_FAST_PATH_MAX_ELEMS = 1 << 19    # 512K elems -> <= 2 MiB per input, single block
_VMEM_LIMIT_BYTES = 32 * 1024 * 1024   # explicit scoped-VMEM limit, ample headroom


# ---------------------------------------------------------------------------
# Wrapper-side layout helper: contiguous flatten -> lane-dense (rows, 128).
# ---------------------------------------------------------------------------
def _flatten_lane_dense(x):
    """Flatten (free for a contiguous array) and view as (rows, 128).

    If the element count is not a multiple of 128, zero-pad the tail (zeros
    contribute nothing to any of the sums below, so no in-kernel element mask
    is needed for the pad region).
    """
    flat = x.reshape(-1)
    t = flat.shape[0]
    pad = (-t) % _LANES
    if pad:
        flat = jnp.pad(flat, (0, pad))
    return flat.reshape(-1, _LANES)


# ---------------------------------------------------------------------------
# Single-block fast path (grid-less): one DMA per input, one reduce.
# ---------------------------------------------------------------------------
def _fast_masked_kernel(pred_ref, gt_ref, mask_ref, out_ref):
    d = pred_ref[...].astype(jnp.float32) - gt_ref[...].astype(jnp.float32)
    m = mask_ref[...]
    num = jnp.sum(d * d * m, keepdims=True)                 # (1, 1)
    den = jnp.sum(m, keepdims=True) + jnp.float32(TINY_NUMBER)
    out_ref[...] = num / den


def _fast_plain_kernel(pred_ref, gt_ref, out_ref, *, n_elems):
    d = pred_ref[...].astype(jnp.float32) - gt_ref[...].astype(jnp.float32)
    out_ref[...] = jnp.sum(d * d, keepdims=True) / jnp.float32(n_elems)


# ---------------------------------------------------------------------------
# Tiled path: grid = (num_slices, blocks_per_slice).
#   axis 0 ("parallel"):  one slice per v7x TensorCore (serialized on v5e/v6e)
#   axis 1 ("arbitrary"): row-block reduction; output block is the per-slice
#                         (8, 128) vreg accumulator (resident across axis 1).
# ---------------------------------------------------------------------------
def _tiled_masked_kernel(pred_ref, gt_ref, mask_ref, sq_out, m_out, *,
                         tile_rows, rows, blocks_per_slice):
    c = pl.program_id(0)
    i = pl.program_id(1)

    @pl.when(i == 0)
    def _():
        sq_out[...] = jnp.zeros_like(sq_out)
        m_out[...] = jnp.zeros_like(m_out)

    d = pred_ref[...].astype(jnp.float32) - gt_ref[...].astype(jnp.float32)
    m = mask_ref[...]
    sq = d * d * m                                            # (tile_rows, 128)

    row0 = (c * blocks_per_slice + i) * tile_rows             # logical first row
    is_clean = row0 + tile_rows <= rows

    def _accumulate(sq_v, m_v):
        # Pure VPU vreg adds; the one cross-lane reduce happens in the wrapper.
        sq_out[...] += jnp.sum(sq_v.reshape(tile_rows // 8, 8, _LANES), axis=0)
        m_out[...] += jnp.sum(m_v.reshape(tile_rows // 8, 8, _LANES), axis=0)

    @pl.when(is_clean)                                        # interior blocks
    def _():
        _accumulate(sq, m)

    @pl.when(jnp.logical_not(is_clean))                       # tail / duplicate
    def _():
        rid = row0 + lax.broadcasted_iota(jnp.int32, (tile_rows, _LANES), 0)
        valid = rid < rows
        _accumulate(jnp.where(valid, sq, 0.0), jnp.where(valid, m, 0.0))


def _tiled_plain_kernel(pred_ref, gt_ref, sq_out, *,
                        tile_rows, rows, blocks_per_slice):
    c = pl.program_id(0)
    i = pl.program_id(1)

    @pl.when(i == 0)
    def _():
        sq_out[...] = jnp.zeros_like(sq_out)

    d = pred_ref[...].astype(jnp.float32) - gt_ref[...].astype(jnp.float32)
    sq = d * d

    row0 = (c * blocks_per_slice + i) * tile_rows
    is_clean = row0 + tile_rows <= rows

    def _accumulate(sq_v):
        sq_out[...] += jnp.sum(sq_v.reshape(tile_rows // 8, 8, _LANES), axis=0)

    @pl.when(is_clean)
    def _():
        _accumulate(sq)

    @pl.when(jnp.logical_not(is_clean))
    def _():
        rid = row0 + lax.broadcasted_iota(jnp.int32, (tile_rows, _LANES), 0)
        _accumulate(jnp.where(rid < rows, sq, 0.0))


# ---------------------------------------------------------------------------
# Wrappers
# ---------------------------------------------------------------------------
def _img2mse_fast(pred2d, gt2d, mask2d, n_elems):
    cp = pltpu.CompilerParams(vmem_limit_bytes=_VMEM_LIMIT_BYTES)
    if mask2d is not None:
        out = pl.pallas_call(
            _fast_masked_kernel,
            out_shape=jax.ShapeDtypeStruct((1, 1), jnp.float32),
            compiler_params=cp,
        )(pred2d, gt2d, mask2d)
    else:
        out = pl.pallas_call(
            functools.partial(_fast_plain_kernel, n_elems=n_elems),
            out_shape=jax.ShapeDtypeStruct((1, 1), jnp.float32),
            compiler_params=cp,
        )(pred2d, gt2d)
    return out[0, 0]


def _img2mse_tiled(pred2d, gt2d, mask2d, n_elems, *, tile_rows=_TILE_ROWS):
    rows = pred2d.shape[0]
    assert tile_rows % 8 == 0, "tile_rows must be a multiple of 8"

    num_blocks = pl.cdiv(rows, tile_rows)
    num_slices = 2 if num_blocks >= 2 else 1      # one slice per v7x TensorCore
    bpc = pl.cdiv(num_blocks, num_slices)         # blocks per slice
    grid = (num_slices, bpc)

    # Clamp so no block index is ever fully out of bounds; duplicate blocks are
    # zeroed in-kernel via the logical (unclamped) row index.
    def in_map(c, i):
        return (jnp.minimum(c * bpc + i, num_blocks - 1), 0)

    in_block = pl.BlockSpec((tile_rows, _LANES), in_map)
    out_block = pl.BlockSpec((8, _LANES), lambda c, i: (c, 0))
    acc_shape = jax.ShapeDtypeStruct((num_slices * 8, _LANES), jnp.float32)

    cp = pltpu.CompilerParams(
        dimension_semantics=("parallel", "arbitrary"),
        vmem_limit_bytes=_VMEM_LIMIT_BYTES,
    )
    # TODO(synk): if a sweep shows the DMA still exposed at short grids, bump
    # the input BlockSpecs to pipeline_mode=pl.Buffered(3).

    if mask2d is not None:
        kernel = functools.partial(_tiled_masked_kernel, tile_rows=tile_rows,
                                   rows=rows, blocks_per_slice=bpc)
        sq_part, m_part = pl.pallas_call(
            kernel,
            out_shape=(acc_shape, acc_shape),
            grid_spec=pltpu.PrefetchScalarGridSpec(
                num_scalar_prefetch=0,
                grid=grid,
                in_specs=[in_block, in_block, in_block],
                out_specs=(out_block, out_block),
            ),
            compiler_params=cp,
        )(pred2d, gt2d, mask2d)
        # Single cross-lane/sublane reduce + divide, outside the hot loop.
        return jnp.sum(sq_part) / (jnp.sum(m_part) + jnp.float32(TINY_NUMBER))

    kernel = functools.partial(_tiled_plain_kernel, tile_rows=tile_rows,
                               rows=rows, blocks_per_slice=bpc)
    sq_part = pl.pallas_call(
        kernel,
        out_shape=acc_shape,
        grid_spec=pltpu.PrefetchScalarGridSpec(
            num_scalar_prefetch=0,
            grid=grid,
            in_specs=[in_block, in_block],
            out_specs=out_block,
        ),
        compiler_params=cp,
    )(pred2d, gt2d)
    return jnp.sum(sq_part) / jnp.float32(n_elems)


def _img2mse_pallas(pred_rgb, gt_rgb, mask=None, *,
                    fast_path_max_elems=_FAST_PATH_MAX_ELEMS,
                    tile_rows=_TILE_ROWS):
    c = pred_rgb.shape[-1]
    n = pred_rgb.size // c
    n_elems = n * c

    pred2d = _flatten_lane_dense(pred_rgb)        # free reshape (+ pad iff needed)
    gt2d = _flatten_lane_dense(gt_rgb)

    if mask is not None:
        # Broadcast the mask per element so it shares the lane-dense layout;
        # denominator then becomes sum(mask_e) + 1e-6 == sum(mask)*C + 1e-6.
        mask_e = jnp.broadcast_to(mask.astype(jnp.float32).reshape(n, 1), (n, c))
        mask2d = _flatten_lane_dense(mask_e)
    else:
        mask2d = None

    if n_elems <= fast_path_max_elems:
        return _img2mse_fast(pred2d, gt2d, mask2d, n_elems)
    return _img2mse_tiled(pred2d, gt2d, mask2d, n_elems, tile_rows=tile_rows)


def masked_l2_image_loss(outputs, ray_batch):
    """Forward pass of MaskedL2ImageLoss."""
    pred_rgb = outputs['rgb']
    gt_rgb = ray_batch['rgb']
    pred_mask = outputs['mask'] if 'mask' in outputs else None
    return _img2mse_pallas(pred_rgb, gt_rgb, pred_mask)


# ---------------------------------------------------------------------------
# Reference + self-test
# ---------------------------------------------------------------------------
def _reference(pred, gt, mask=None):
    pred = pred.astype(jnp.float32)
    gt = gt.astype(jnp.float32)
    if mask is not None:
        m = mask.astype(jnp.float32)
        return jnp.sum((pred - gt) ** 2 * m[..., None]) / (
            jnp.sum(m) * pred.shape[-1] + TINY_NUMBER)
    return jnp.mean((pred - gt) ** 2)


if __name__ == "__main__":
    key = jax.random.PRNGKey(0)
    k1, k2, k3, k4, k5, k6 = jax.random.split(key, 6)

    # --- typical ray batch: fast path, lane-aligned (N*C % 128 == 0) --------
    N, C = 512, 3
    pred = jax.random.uniform(k1, (N, C), dtype=jnp.float32)
    gt = jax.random.uniform(k2, (N, C), dtype=jnp.float32)
    mask = (jax.random.uniform(k3, (N,)) > 0.3).astype(jnp.float32)

    loss = jax.block_until_ready(
        masked_l2_image_loss({'rgb': pred, 'mask': mask}, {'rgb': gt}))
    ref = _reference(pred, gt, mask)
    assert jnp.allclose(loss, ref, rtol=1e-5, atol=1e-6), (loss, ref)

    loss_nm = jax.block_until_ready(
        masked_l2_image_loss({'rgb': pred}, {'rgb': gt}))
    ref_nm = _reference(pred, gt)
    assert jnp.allclose(loss_nm, ref_nm, rtol=1e-5, atol=1e-6), (loss_nm, ref_nm)

    # --- non-lane-aligned ray count: exercises the zero-pad path ------------
    N2 = 200
    pred2 = jax.random.uniform(k4, (N2, C), dtype=jnp.float32)
    gt2 = jax.random.uniform(k5, (N2, C), dtype=jnp.float32)
    mask2 = (jax.random.uniform(k6, (N2,)) > 0.5).astype(jnp.float32)
    loss2 = jax.block_until_ready(_img2mse_pallas(pred2, gt2, mask2))
    ref2 = _reference(pred2, gt2, mask2)
    assert jnp.allclose(loss2, ref2, rtol=1e-5, atol=1e-6), (loss2, ref2)

    # --- tiled path (2-slice grid, odd block count -> clamp + ragged tail) --
    N3 = 2048            # rows = 48 at C=3; tile_rows=16 -> 3 blocks -> grid (2, 2)
    pred3 = jax.random.uniform(k1, (N3, C), dtype=jnp.float32)
    gt3 = jax.random.uniform(k2, (N3, C), dtype=jnp.float32)
    mask3 = (jax.random.uniform(k3, (N3,)) > 0.3).astype(jnp.float32)

    loss3 = jax.block_until_ready(
        _img2mse_pallas(pred3, gt3, mask3, fast_path_max_elems=0, tile_rows=16))
    ref3 = _reference(pred3, gt3, mask3)
    assert jnp.allclose(loss3, ref3, rtol=1e-5, atol=1e-6), (loss3, ref3)

    loss3_nm = jax.block_until_ready(
        _img2mse_pallas(pred3, gt3, None, fast_path_max_elems=0, tile_rows=16))
    ref3_nm = _reference(pred3, gt3)
    assert jnp.allclose(loss3_nm, ref3_nm, rtol=1e-5, atol=1e-6), (loss3_nm, ref3_nm)

    print("KERNEL_OK")
</pallas_src>

<mosaic_0001>
module attributes {stable_mosaic.version = 11 : i64} {
  func.func @_fast_masked_kernel(%arg0: memref<12x128xf32, #tpu.memory_space<vmem>>, %arg1: memref<12x128xf32, #tpu.memory_space<vmem>>, %arg2: memref<12x128xf32, #tpu.memory_space<vmem>>, %arg3: memref<1x1xf32, #tpu.memory_space<vmem>>) attributes {dimension_semantics = [], scalar_prefetch = 0 : i64, scratch_operands = 0 : i64, tpu.core_type = #tpu.core_type<tc>} {
    %c0 = arith.constant 0 : index
    %c0_0 = arith.constant 0 : index
    %0 = vector.load %arg0[%c0, %c0_0] : memref<12x128xf32, #tpu.memory_space<vmem>>, vector<12x128xf32>
    %c0_1 = arith.constant 0 : index
    %c0_2 = arith.constant 0 : index
    %1 = vector.load %arg1[%c0_1, %c0_2] : memref<12x128xf32, #tpu.memory_space<vmem>>, vector<12x128xf32>
    %2 = arith.subf %0, %1 : vector<12x128xf32>
    %c0_3 = arith.constant 0 : index
    %c0_4 = arith.constant 0 : index
    %3 = vector.load %arg2[%c0_3, %c0_4] : memref<12x128xf32, #tpu.memory_space<vmem>>, vector<12x128xf32>
    %4 = arith.mulf %2, %2 : vector<12x128xf32>
    %5 = arith.mulf %4, %3 : vector<12x128xf32>
    %6 = vector.shape_cast %5 : vector<12x128xf32> to vector<1x12x128xf32>
    %cst = arith.constant dense<0.000000e+00> : vector<1xf32>
    %7 = vector.multi_reduction <add>, %6, %cst [1, 2] : vector<1x12x128xf32> to vector<1xf32>
    %8 = vector.shape_cast %7 : vector<1xf32> to vector<1x1x1xf32>
    %9 = vector.extract %8[0, 0, 0] : f32 from vector<1x1x1xf32>
    %10 = vector.broadcast %9 : f32 to vector<1x1xf32>
    %11 = vector.shape_cast %3 : vector<12x128xf32> to vector<1x12x128xf32>
    %cst_5 = arith.constant dense<0.000000e+00> : vector<1xf32>
    %12 = vector.multi_reduction <add>, %11, %cst_5 [1, 2] : vector<1x12x128xf32> to vector<1xf32>
    %13 = vector.shape_cast %12 : vector<1xf32> to vector<1x1x1xf32>
    %14 = vector.extract %13[0, 0, 0] : f32 from vector<1x1x1xf32>
    %15 = vector.broadcast %14 : f32 to vector<1x1xf32>
    %cst_6 = arith.constant 9.99999997E-7 : f32
    %16 = vector.broadcast %cst_6 : f32 to vector<1x1xf32>
    %17 = arith.addf %15, %16 : vector<1x1xf32>
    %18 = arith.divf %10, %17 : vector<1x1xf32>
    %c0_7 = arith.constant 0 : index
    %c0_8 = arith.constant 0 : index
    %19 = vector.load %arg3[%c0_7, %c0_8] : memref<1x1xf32, #tpu.memory_space<vmem>>, vector<1x1xf32>
    tpu.vector_store %arg3[%c0_7, %c0_8], %18 {strides = array<i32>} : memref<1x1xf32, #tpu.memory_space<vmem>>, vector<1x1xf32>,
    return
  }
}

</mosaic_0001>

<llo_original>
// kernel: tpu_custom_call.1
$region0: #{tpu_custom_call.1}
  #allocation0 [shape = 'u32[]', space=smem, size = 0x4, offset = 0x4, fixed_abs, tag = 'smem constant byte address 0x4 - core index']
  #allocation1 [shape = 'u32[144,128]{1,0:T(1,128)}', space=vmem, size = 0x12000, scoped, tag = 'internal scratch']
  %s0 = inlined_call_operand.hbm [shape: f32[12,128], index: 0, kind: input, shape index: {}]
  %s1 = inlined_call_operand.hbm [shape: f32[12,128], index: 1, kind: input, shape index: {}]
  %s2 = inlined_call_operand.hbm [shape: f32[12,128], index: 2, kind: input, shape index: {}]
  %s3 = inlined_call_operand.hbm [shape: f32[1,1], index: 3, kind: output, shape index: {}]
  %s4 = sld [smem:[#allocation0]]
  $region34: #{tpu_custom_call.1} parent=0
    _
  %s6 = ssub.s32 1, %s4
  %s7 = scalar_select 0, %s6, %s4
  $region1: #{tpu_custom_call.1} parent=0
    #allocation2 [shape = 'u8[8192]{0}', space=vmem, size = 0x2000, scoped, tag = 'input window, operand 0, single buffered']
    #allocation3 [shape = 's32[1]{0}', space=sflag, size = 0x4, scoped, tag = 'scoped memory for tpu_custom_call.1']
    #allocation4 [shape = 's32[1]{0}', space=sflag, size = 0x4, scoped, tag = 'scoped memory for tpu_custom_call.1']
    #allocation5 [shape = 'u8[8192]{0}', space=vmem, size = 0x2000, scoped, tag = 'input window, operand 1, single buffered']
    #allocation6 [shape = 's32[1]{0}', space=sflag, size = 0x4, scoped, tag = 'scoped memory for tpu_custom_call.1']
    #allocation7 [shape = 'u8[8192]{0}', space=vmem, size = 0x2000, scoped, tag = 'input window, operand 2, single buffered']
    #allocation8 [shape = 'u8[512]{0}', space=vmem, size = 0x400, scoped, tag = 'output window, operand 0, single buffered']
    %8 = vsyncpa [#allocation3], 0
    %9 = vsyncpa [#allocation6], 0
    %10 = vsyncpa [#allocation4], 0
    // Predicated region
    $region2: #{tpu_custom_call.1} parent=1 // pred_check
      _
    $region3: #{tpu_custom_call.1} parent=1 // pred_check_branch
      %12 = sbr.rel (0) target = $region5
    $region4: #{tpu_custom_call.1} parent=1 // pred_region
      %s14 = ssub.s32 256, 256
      %15 = vsyncadd [#allocation3], %s14
      %s16 = sshll.u32 [#allocation2], 4
      %s17 = int_to_ptr.vmem [resolvable:$true] %s16
      %22 = dma.hbm_to_vmem [thread:$0]  %s0, 256, %s17, [#allocation3], 128, 128, 8
    $region5: #{tpu_custom_call.1} parent=1 // pred_fallthru
      _
    // Predicated region
    $region6: #{tpu_custom_call.1} parent=1 // pred_check
      _
    $region7: #{tpu_custom_call.1} parent=1 // pred_check_branch
      %24 = sbr.rel (0) target = $region9
    $region8: #{tpu_custom_call.1} parent=1 // pred_region
      %s26 = ssub.s32 256, 256
      %27 = vsyncadd [#allocation6], %s26
      %s28 = sshll.u32 [#allocation5], 4
      %s29 = int_to_ptr.vmem [resolvable:$true] %s28
      %34 = dma.hbm_to_vmem [thread:$0]  %s1, 256, %s29, [#allocation6], 128, 128, 8
    $region9: #{tpu_custom_call.1} parent=1 // pred_fallthru
      _
    // Predicated region
    $region10: #{tpu_custom_call.1} parent=1 // pred_check
      _
    $region11: #{tpu_custom_call.1} parent=1 // pred_check_branch
      %36 = sbr.rel (0) target = $region13
    $region12: #{tpu_custom_call.1} parent=1 // pred_region
      %s38 = ssub.s32 256, 256
      %39 = vsyncadd [#allocation6], %s38
      %s40 = sshll.u32 [#allocation7], 4
      %s41 = int_to_ptr.vmem [resolvable:$true] %s40
      %46 = dma.hbm_to_vmem [thread:$0]  %s2, 256, %s41, [#allocation6], 128, 128, 8
    $region13: #{tpu_custom_call.1} parent=1 // pred_fallthru
      _
    // Predicated region
    $region14: #{tpu_custom_call.1} parent=1 // pred_check
      _
    $region15: #{tpu_custom_call.1} parent=1 // pred_check_branch
      %48 = sbr.rel (0) target = $region17
    $region16: #{tpu_custom_call.1} parent=1 // pred_region
      %49 = dma.done [#allocation3], 256
    $region17: #{tpu_custom_call.1} parent=1 // pred_fallthru
      _
    // Predicated region
    $region18: #{tpu_custom_call.1} parent=1 // pred_check
      _
    $region19: #{tpu_custom_call.1} parent=1 // pred_check_branch
      %51 = sbr.rel (0) target = $region21
    $region20: #{tpu_custom_call.1} parent=1 // pred_region
      %52 = dma.done [#allocation6], 256
    $region21: #{tpu_custom_call.1} parent=1 // pred_fallthru
      _
    // Predicated region
    $region22: #{tpu_custom_call.1} parent=1 // pred_check
      _
    $region23: #{tpu_custom_call.1} parent=1 // pred_check_branch
      %54 = sbr.rel (0) target = $region25
    $region24: #{tpu_custom_call.1} parent=1 // pred_region
      %55 = dma.done [#allocation6], 256
    $region25: #{tpu_custom_call.1} parent=1 // pred_fallthru
      _
    %v56 = vld [vmem:[#allocation2] sm:$0xff]
    %v57 = vld [vmem:[#allocation2 + $0x8] sm:$0xf]
    %v58 = vld [vmem:[#allocation5] sm:$0xff]
    %v59 = vld [vmem:[#allocation5 + $0x8] sm:$0xf]
    %v60 = vsub.f32 %v56, %v58
    %v61 = vsub.f32 %v57, %v59
    %v62 = vld [vmem:[#allocation7] sm:$0xff]
    %v63 = vld [vmem:[#allocation7 + $0x8] sm:$0xf]
    %v64 = vmul.f32 %v60, %v60
    %v65 = vmul.f32 %v61, %v61
    %v66 = vmul.f32 %v64, %v62
    %v67 = vmul.f32 %v65, %v63
    %vm68 = vcmask 1043456
    %v69 = vsel %vm68, %v67, 0.0
    %v70 = vadd.f32 %v66, %v69
    %71 = vadd.xlane.f32.xlu0 %v70
    %v72 = vpop.xlane.xlu0 %71
    %v73 = vrot.slane %v72, 4
    %v74 = vadd.f32 %v72, %v73
    %v75 = vrot.slane %v74, 2
    %v76 = vadd.f32 %v74, %v75
    %v77 = vrot.slane %v76, 1
    %v78 = vadd.f32 %v76, %v77
    %s79 = vtos %v78
    %v80 = vstv %s79
    %v81 = vsel %vm68, %v63, 0.0
    %v82 = vadd.f32 %v62, %v81
    %83 = vadd.xlane.f32.xlu0 %v82
    %v84 = vpop.xlane.xlu0 %83
    %v85 = vrot.slane %v84, 4
    %v86 = vadd.f32 %v84, %v85
    %v87 = vrot.slane %v86, 2
    %v88 = vadd.f32 %v86, %v87
    %v89 = vrot.slane %v88, 1
    %v90 = vadd.f32 %v88, %v89
    %s91 = vtos %v90
    %v92 = vstv %s91
    %v93 = vadd.f32 %v92, 1e-06
    %v94 = vrcp.pop %v93
    %v95 = vmul.f32 %v80, %v94
    %vm96 = vcmask 0
    %97 = vst.msk [vmem:[#allocation8] sm:$0x1] %vm96, %v95
    // Predicated region
    $region26: #{tpu_custom_call.1} parent=1 // pred_check
      _
    $region27: #{tpu_custom_call.1} parent=1 // pred_check_branch
      %99 = sbr.rel (0) target = $region29
    $region28: #{tpu_custom_call.1} parent=1 // pred_region
      %s101 = ssub.s32 16, 16
      %102 = vsyncadd [#allocation4], %s101
      %s104 = sshll.u32 [#allocation8], 4
      %s105 = int_to_ptr.vmem [resolvable:$true] %s104
      %107 = dma.vmem_to_hbm [thread:$0]  %s105, 16, %s3, [#allocation4]
    $region29: #{tpu_custom_call.1} parent=1 // pred_fallthru
      _
    // Predicated region
    $region30: #{tpu_custom_call.1} parent=1 // pred_check
      _
    $region31: #{tpu_custom_call.1} parent=1 // pred_check_branch
      %109 = sbr.rel (0) target = $region33
    $region32: #{tpu_custom_call.1} parent=1 // pred_region
      %110 = dma.done [#allocation4], 16
    $region33: #{tpu_custom_call.1} parent=1 // pred_fallthru
      _
    %111 = vsyncpa [#allocation3], 1
    %112 = vsyncpa [#allocation6], 1
    %113 = vsyncpa [#allocation4], 1

</llo_original>
